<compile_context>
chip_gen: v6e
topology: v6e:2x2x1
jax: 0.10.0
libtpu: 0.0.40
codegen_flags: <defaults>
</compile_context>

<pallas_src>
import functools

import jax
import jax.numpy as jnp
from jax import lax
from jax.experimental import pallas as pl
from jax.experimental.pallas import tpu as pltpu


def _round_up(x, m):
    return ((x + m - 1) // m) * m


# ----------------------------------------------------------------------------
# Kernel 1: 1x1 conv (per-pixel linear projection) fused with pos-embed add
# ----------------------------------------------------------------------------
def _conv1x1_pos_kernel(x_ref, w_ref, b_ref, pos_ref, o_ref):
    # x: (TM, C) bf16   w: (C, D) bf16   b: (1, D) f32   pos: (TM, D) f32
    acc = jnp.dot(x_ref[...], w_ref[...], preferred_element_type=jnp.float32)
    o_ref[...] = acc + b_ref[...] + pos_ref[...]


def conv1x1_add_pos(x_nchw, w_cd, b_d, pos_nchw, *, tm=512):
    """nn.Conv2d(C, D, 1) on NCHW input, + pos embed; returns memory [B, HW, D]."""
    B, C, H, W = x_nchw.shape
    D = w_cd.shape[1]
    N = B * H * W

    # glue: NCHW -> channels-last flat [N, C] (single unavoidable layout change)
    x_flat = jnp.transpose(x_nchw, (0, 2, 3, 1)).reshape(N, C).astype(jnp.bfloat16)
    pos_flat = jnp.transpose(pos_nchw, (0, 2, 3, 1)).reshape(N, D).astype(jnp.float32)

    # row tile: multiple of 16 (bf16 sublane packing), capped for v7x VMEM.
    tm = min(tm, _round_up(N, 16))
    n_pad = _round_up(N, tm)
    if n_pad != N:
        x_flat = jnp.pad(x_flat, ((0, n_pad - N), (0, 0)))
        pos_flat = jnp.pad(pos_flat, ((0, n_pad - N), (0, 0)))

    grid = (n_pad // tm,)
    flops = 2 * n_pad * C * D
    bytes_accessed = n_pad * C * 2 + C * D * 2 + n_pad * D * 4 + D * 4 + n_pad * D * 4

    out_flat = pl.pallas_call(
        _conv1x1_pos_kernel,
        out_shape=jax.ShapeDtypeStruct((n_pad, D), jnp.float32),
        grid=grid,
        in_specs=[
            pl.BlockSpec((tm, C), lambda i: (i, 0)),   # x tile
            pl.BlockSpec((C, D), lambda i: (0, 0)),    # weight, resident
            pl.BlockSpec((1, D), lambda i: (0, 0)),    # bias, resident
            pl.BlockSpec((tm, D), lambda i: (i, 0)),   # pos tile
        ],
        out_specs=pl.BlockSpec((tm, D), lambda i: (i, 0)),
        compiler_params=pltpu.CompilerParams(
            dimension_semantics=("parallel",),
            vmem_limit_bytes=32 * 1024 * 1024,
        ),
        cost_estimate=pl.CostEstimate(
            flops=flops, transcendentals=0, bytes_accessed=bytes_accessed),
    )(x_flat, w_cd.astype(jnp.bfloat16),
      b_d.reshape(1, D).astype(jnp.float32), pos_flat)

    return out_flat[:N].reshape(B, H * W, D)


# ----------------------------------------------------------------------------
# Kernel 2: vocab_embed MLP (3 layers, ReLU between hidden layers)
# ----------------------------------------------------------------------------
def _mlp3_kernel(x_ref, w1_ref, b1_ref, w2_ref, b2_ref, w3_ref, b3_ref, o_ref):
    h = jnp.dot(x_ref[...], w1_ref[...], preferred_element_type=jnp.float32) + b1_ref[...]
    h = jnp.maximum(h, 0.0).astype(w2_ref.dtype)
    h = jnp.dot(h, w2_ref[...], preferred_element_type=jnp.float32) + b2_ref[...]
    h = jnp.maximum(h, 0.0).astype(w3_ref.dtype)
    o_ref[...] = jnp.dot(h, w3_ref[...], preferred_element_type=jnp.float32) + b3_ref[...]


def vocab_embed_mlp(x_bqd, params, *, tm=512):
    """MLP(hidden, hidden, vocab, num_layers=3) applied over last dim."""
    B, Q, D = x_bqd.shape
    V = params["w3"].shape[1]
    Vp = _round_up(V, 128)          # lane-dense output stores
    N = B * Q

    x_flat = x_bqd.reshape(N, D).astype(jnp.bfloat16)
    tm = min(tm, _round_up(N, 16))
    n_pad = _round_up(N, tm)
    if n_pad != N:
        x_flat = jnp.pad(x_flat, ((0, n_pad - N), (0, 0)))

    w1 = params["w1"].astype(jnp.bfloat16)
    w2 = params["w2"].astype(jnp.bfloat16)
    w3 = jnp.pad(params["w3"], ((0, 0), (0, Vp - V))).astype(jnp.bfloat16)
    b1 = params["b1"].reshape(1, D).astype(jnp.float32)
    b2 = params["b2"].reshape(1, D).astype(jnp.float32)
    b3 = jnp.pad(params["b3"], (0, Vp - V)).reshape(1, Vp).astype(jnp.float32)

    grid = (n_pad // tm,)
    flops = 2 * n_pad * (D * D + D * D + D * Vp)
    bytes_accessed = (n_pad * D * 2 + 2 * D * D * 2 + D * Vp * 2
                      + 2 * D * 4 + Vp * 4 + n_pad * Vp * 4)

    out_flat = pl.pallas_call(
        _mlp3_kernel,
        out_shape=jax.ShapeDtypeStruct((n_pad, Vp), jnp.float32),
        grid=grid,
        in_specs=[
            pl.BlockSpec((tm, D), lambda i: (i, 0)),    # activations tile
            pl.BlockSpec((D, D), lambda i: (0, 0)),     # w1 resident
            pl.BlockSpec((1, D), lambda i: (0, 0)),     # b1
            pl.BlockSpec((D, D), lambda i: (0, 0)),     # w2 resident
            pl.BlockSpec((1, D), lambda i: (0, 0)),     # b2
            pl.BlockSpec((D, Vp), lambda i: (0, 0)),    # w3 resident (V padded)
            pl.BlockSpec((1, Vp), lambda i: (0, 0)),    # b3 (V padded)
        ],
        out_specs=pl.BlockSpec((tm, Vp), lambda i: (i, 0)),
        compiler_params=pltpu.CompilerParams(
            dimension_semantics=("parallel",),
            vmem_limit_bytes=32 * 1024 * 1024,
        ),
        cost_estimate=pl.CostEstimate(
            flops=flops, transcendentals=0, bytes_accessed=bytes_accessed),
    )(x_flat, w1, b1, w2, b2, w3, b3)

    return out_flat[:N, :V].reshape(B, Q, V)


# ----------------------------------------------------------------------------
# Kernel 3: stand-in for the injected `transformer` module
# (single-head cross-attention: learned queries attend to image memory)
# TODO(synk): the real pix2sg transformer (and the image backbone) are injected
#             submodules whose code is not part of this module; this kernel is
#             a deterministic stand-in producing hs[0] of shape [B, Q, D].
# ----------------------------------------------------------------------------
def _xattn_kernel(q_ref, mem_ref, o_ref, *, scale):
    q = q_ref[...]            # (Q, D) bf16
    mem = mem_ref[0]          # (L, D) bf16
    # Contract D-with-D directly (no materialized transpose of memory).
    scores = lax.dot_general(
        q, mem, dimension_numbers=(((1,), (1,)), ((), ())),
        preferred_element_type=jnp.float32) * scale
    scores = scores - jnp.max(scores, axis=-1, keepdims=True)
    p = jnp.exp(scores)
    denom = jnp.sum(p, axis=-1, keepdims=True)
    attn = (p * pl.reciprocal(denom, approx=True)).astype(mem.dtype)
    o_ref[0] = jnp.dot(attn, mem, preferred_element_type=jnp.float32)


def transformer_standin(memory_bld, query_embed_qd):
    """memory_bld: [B, HW, D], query_embed_qd: [Q, D] -> hs0 [B, Q, D]."""
    B, L, D = memory_bld.shape
    Q = query_embed_qd.shape[0]
    scale = 1.0 / (D ** 0.5)
    # TODO(synk): if HW grows large (multi-scale features), switch to a
    #             KV-tiled online-softmax (flash-style) variant.
    return pl.pallas_call(
        functools.partial(_xattn_kernel, scale=scale),
        out_shape=jax.ShapeDtypeStruct((B, Q, D), jnp.float32),
        grid=(B,),
        in_specs=[
            pl.BlockSpec((Q, D), lambda b: (0, 0)),
            pl.BlockSpec((1, L, D), lambda b: (b, 0, 0)),
        ],
        out_specs=pl.BlockSpec((1, Q, D), lambda b: (b, 0, 0)),
        compiler_params=pltpu.CompilerParams(dimension_semantics=("parallel",)),
    )(query_embed_qd.astype(jnp.bfloat16), memory_bld.astype(jnp.bfloat16))


# ----------------------------------------------------------------------------
# DETR forward (training path: out = vocab_embed(hs[0]))
# ----------------------------------------------------------------------------
def detr_forward(params, image_src, image_mask, image_pos_embed, sequence):
    # TODO(synk): image_backbone is an injected module (not provided);
    #             `image_src` is treated as the backbone's final feature map.
    # input_proj_image (1x1 conv) fused with the pos-embed add; the kernel
    # emits the transformer memory [B, HW, D] directly (DETR's flatten+permute
    # is absorbed into the output layout — no NCHW round trip).
    mem = conv1x1_add_pos(
        image_src, params["conv_w"], params["conv_b"], image_pos_embed)

    # TODO(synk): image_mask / sequence / max_num_rels are consumed by the real
    #             injected transformer; the stand-in ignores them.
    del image_mask, sequence

    hs0 = transformer_standin(mem, params["query_embed"])            # [B, Q, D]
    hs = (hs0,)

    # training path: out = self.vocab_embed(hs[0])
    out = vocab_embed_mlp(hs[0], params["mlp"])                      # [B, Q, V]
    return out


# ----------------------------------------------------------------------------
# Deterministic parameter init + example run
# ----------------------------------------------------------------------------
def init_params(key, num_channels, hidden_dim, num_queries, vocab_size):
    ks = jax.random.split(key, 10)
    s = 0.02
    return {
        # Conv2d(num_channels, hidden_dim, 1): stored as [C, D] for matmul.
        "conv_w": s * jax.random.normal(ks[0], (num_channels, hidden_dim), jnp.float32),
        "conv_b": s * jax.random.normal(ks[1], (hidden_dim,), jnp.float32),
        "query_embed": s * jax.random.normal(ks[2], (num_queries, hidden_dim), jnp.float32),
        "mlp": {
            "w1": s * jax.random.normal(ks[3], (hidden_dim, hidden_dim), jnp.float32),
            "b1": s * jax.random.normal(ks[4], (hidden_dim,), jnp.float32),
            "w2": s * jax.random.normal(ks[5], (hidden_dim, hidden_dim), jnp.float32),
            "b2": s * jax.random.normal(ks[6], (hidden_dim,), jnp.float32),
            "w3": s * jax.random.normal(ks[7], (hidden_dim, vocab_size), jnp.float32),
            "b3": s * jax.random.normal(ks[8], (vocab_size,), jnp.float32),
        },
    }


if __name__ == "__main__":
    B, C, H, W = 2, 64, 8, 8      # backbone feature map (NCHW)
    hidden_dim = 32               # transformer.d_model
    num_queries = 8
    vocab_size = 40               # NO_KNOWN_TOKEN + 1

    key = jax.random.PRNGKey(0)
    k_in, k_pos, k_seq, k_par = jax.random.split(key, 4)

    image_src = jax.random.normal(k_in, (B, C, H, W), jnp.float32)
    image_mask = jnp.zeros((B, H, W), jnp.bool_)
    image_pos_embed = jax.random.normal(k_pos, (B, hidden_dim, H, W), jnp.float32)
    sequence = jax.random.randint(k_seq, (B, num_queries), 0, vocab_size)

    params = init_params(k_par, C, hidden_dim, num_queries, vocab_size)

    out = jax.jit(detr_forward)(params, image_src, image_mask, image_pos_embed, sequence)
    out = jax.block_until_ready(out)

    assert out.shape == (B, num_queries, vocab_size), out.shape
    assert out.dtype == jnp.float32
    assert bool(jnp.all(jnp.isfinite(out)))
    print("KERNEL_OK")
</pallas_src>

<mosaic_0001>
module attributes {stable_mosaic.version = 11 : i64} {
  func.func @_conv1x1_pos_kernel(%arg0: i32, %arg1: memref<128x64xbf16, #tpu.memory_space<vmem>>, %arg2: memref<64x32xbf16, #tpu.memory_space<vmem>>, %arg3: memref<1x32xf32, #tpu.memory_space<vmem>>, %arg4: memref<128x32xf32, #tpu.memory_space<vmem>>, %arg5: memref<128x32xf32, #tpu.memory_space<vmem>>) attributes {dimension_semantics = [#tpu.dimension_semantics<parallel>], iteration_bounds = array<i64: 1>, scalar_prefetch = 0 : i64, scratch_operands = 0 : i64, tpu.core_type = #tpu.core_type<tc>, window_params = [{transform_indices = @transform_0, window_bounds = array<i64: 128, 64>}, {pipeline_mode = #tpu.pipeline_mode<synchronous>, transform_indices = @transform_1, window_bounds = array<i64: 64, 32>}, {pipeline_mode = #tpu.pipeline_mode<synchronous>, transform_indices = @transform_2, window_bounds = array<i64: 1, 32>}, {transform_indices = @transform_3, window_bounds = array<i64: 128, 32>}, {transform_indices = @transform_4, window_bounds = array<i64: 128, 32>}]} {
    %c0 = arith.constant 0 : index
    %c0_0 = arith.constant 0 : index
    %0 = vector.load %arg1[%c0, %c0_0] : memref<128x64xbf16, #tpu.memory_space<vmem>>, vector<128x64xbf16>
    %c0_1 = arith.constant 0 : index
    %c0_2 = arith.constant 0 : index
    %1 = vector.load %arg2[%c0_1, %c0_2] : memref<64x32xbf16, #tpu.memory_space<vmem>>, vector<64x32xbf16>
    %cst = arith.constant dense<0.000000e+00> : vector<128x32xf32>
    %2 = tpu.matmul %0, %1, %cst {dimension_numbers = #tpu.dot_dimension_numbers<[1], [0], [0], [1], [0, 0, 1, 1], [], []>} : vector<128x64xbf16>, vector<64x32xbf16>, vector<128x32xf32> -> vector<128x32xf32>
    %c0_3 = arith.constant 0 : index
    %c0_4 = arith.constant 0 : index
    %3 = vector.load %arg3[%c0_3, %c0_4] : memref<1x32xf32, #tpu.memory_space<vmem>>, vector<1x32xf32>
    %4 = vector.broadcast %3 : vector<1x32xf32> to vector<128x32xf32>
    %5 = arith.addf %2, %4 : vector<128x32xf32>
    %c0_5 = arith.constant 0 : index
    %c0_6 = arith.constant 0 : index
    %6 = vector.load %arg4[%c0_5, %c0_6] : memref<128x32xf32, #tpu.memory_space<vmem>>, vector<128x32xf32>
    %7 = arith.addf %5, %6 : vector<128x32xf32>
    %c0_7 = arith.constant 0 : index
    %c0_8 = arith.constant 0 : index
    %8 = vector.load %arg5[%c0_7, %c0_8] : memref<128x32xf32, #tpu.memory_space<vmem>>, vector<128x32xf32>
    tpu.vector_store %arg5[%c0_7, %c0_8], %7 {strides = array<i32>} : memref<128x32xf32, #tpu.memory_space<vmem>>, vector<128x32xf32>,
    return
  }
  func.func @transform_0(%arg0: i32) -> (i32, i32) {
    %c0_i32 = arith.constant 0 : i32
    %c0_i32_0 = arith.constant 0 : i32
    return %arg0, %c0_i32 : i32, i32
  }
  func.func @transform_1(%arg0: i32) -> (i32, i32) {
    %c0_i32 = arith.constant 0 : i32
    %c0_i32_0 = arith.constant 0 : i32
    %c0_i32_1 = arith.constant 0 : i32
    return %c0_i32, %c0_i32_0 : i32, i32
  }
  func.func @transform_2(%arg0: i32) -> (i32, i32) {
    %c0_i32 = arith.constant 0 : i32
    %c0_i32_0 = arith.constant 0 : i32
    %c0_i32_1 = arith.constant 0 : i32
    return %c0_i32, %c0_i32_0 : i32, i32
  }
  func.func @transform_3(%arg0: i32) -> (i32, i32) {
    %c0_i32 = arith.constant 0 : i32
    %c0_i32_0 = arith.constant 0 : i32
    return %arg0, %c0_i32 : i32, i32
  }
  func.func @transform_4(%arg0: i32) -> (i32, i32) {
    %c0_i32 = arith.constant 0 : i32
    %c0_i32_0 = arith.constant 0 : i32
    return %arg0, %c0_i32 : i32, i32
  }
}

module attributes {stable_mosaic.version = 11 : i64} {
  func.func @_xattn_kernel(%arg0: i32, %arg1: memref<8x32xbf16, #tpu.memory_space<vmem>>, %arg2: memref<1x64x32xbf16, #tpu.memory_space<vmem>>, %arg3: memref<1x8x32xf32, #tpu.memory_space<vmem>>) attributes {dimension_semantics = [#tpu.dimension_semantics<parallel>], iteration_bounds = array<i64: 2>, scalar_prefetch = 0 : i64, scratch_operands = 0 : i64, tpu.core_type = #tpu.core_type<tc>, window_params = [{pipeline_mode = #tpu.pipeline_mode<synchronous>, transform_indices = @transform_0, window_bounds = array<i64: 8, 32>}, {transform_indices = @transform_1, window_bounds = array<i64: 1, 64, 32>}, {transform_indices = @transform_2, window_bounds = array<i64: 1, 8, 32>}]} {
    %c0 = arith.constant 0 : index
    %c0_0 = arith.constant 0 : index
    %0 = vector.load %arg1[%c0, %c0_0] : memref<8x32xbf16, #tpu.memory_space<vmem>>, vector<8x32xbf16>
    %c0_1 = arith.constant 0 : index
    %c0_2 = arith.constant 0 : index
    %c0_3 = arith.constant 0 : index
    %1 = vector.load %arg2[%c0_1, %c0_2, %c0_3] : memref<1x64x32xbf16, #tpu.memory_space<vmem>>, vector<1x64x32xbf16>
    %2 = vector.shape_cast %1 : vector<1x64x32xbf16> to vector<64x32xbf16>
    %cst = arith.constant dense<0.000000e+00> : vector<8x64xf32>
    %3 = tpu.matmul %0, %2, %cst {dimension_numbers = #tpu.dot_dimension_numbers<[1], [1], [0], [0], [0, 0, 1, 0], [], []>} : vector<8x32xbf16>, vector<64x32xbf16>, vector<8x64xf32> -> vector<8x64xf32>
    %cst_4 = arith.constant 0.176776692 : f32
    %4 = vector.broadcast %cst_4 : f32 to vector<8x64xf32>
    %5 = arith.mulf %3, %4 : vector<8x64xf32>
    %cst_5 = arith.constant dense<0xFF800000> : vector<8xf32>
    %6 = vector.multi_reduction <maximumf>, %5, %cst_5 [1] : vector<8x64xf32> to vector<8xf32>
    %7 = vector.shape_cast %6 : vector<8xf32> to vector<8x1xf32>
    %8 = vector.broadcast %7 : vector<8x1xf32> to vector<8x64xf32>
    %9 = arith.subf %5, %8 : vector<8x64xf32>
    %10 = math.exp %9 : vector<8x64xf32>
    %cst_6 = arith.constant dense<0.000000e+00> : vector<8xf32>
    %11 = vector.multi_reduction <add>, %10, %cst_6 [1] : vector<8x64xf32> to vector<8xf32>
    %12 = vector.shape_cast %11 : vector<8xf32> to vector<8x1xf32>
    %13 = tpu.reciprocal %12 {approx = true} : vector<8x1xf32> -> vector<8x1xf32>
    %14 = vector.broadcast %13 : vector<8x1xf32> to vector<8x64xf32>
    %15 = arith.mulf %10, %14 : vector<8x64xf32>
    %16 = arith.truncf %15 : vector<8x64xf32> to vector<8x64xbf16>
    %cst_7 = arith.constant dense<0.000000e+00> : vector<8x32xf32>
    %17 = tpu.matmul %16, %2, %cst_7 {dimension_numbers = #tpu.dot_dimension_numbers<[1], [0], [0], [1], [0, 0, 1, 1], [], []>} : vector<8x64xbf16>, vector<64x32xbf16>, vector<8x32xf32> -> vector<8x32xf32>
    %c0_8 = arith.constant 0 : index
    %c0_9 = arith.constant 0 : index
    %c0_10 = arith.constant 0 : index
    %18 = vector.load %arg3[%c0_8, %c0_9, %c0_10] : memref<1x8x32xf32, #tpu.memory_space<vmem>>, vector<1x8x32xf32>
    %19 = vector.shape_cast %18 : vector<1x8x32xf32> to vector<8x32xf32>
    %20 = vector.shape_cast %17 : vector<8x32xf32> to vector<1x8x32xf32>
    tpu.vector_store %arg3[%c0_8, %c0_9, %c0_10], %20 {strides = array<i32>} : memref<1x8x32xf32, #tpu.memory_space<vmem>>, vector<1x8x32xf32>,
    return
  }
  func.func @transform_0(%arg0: i32) -> (i32, i32) {
    %c0_i32 = arith.constant 0 : i32
    %c0_i32_0 = arith.constant 0 : i32
    %c0_i32_1 = arith.constant 0 : i32
    return %c0_i32, %c0_i32_0 : i32, i32
  }
  func.func @transform_1(%arg0: i32) -> (i32, i32, i32) {
    %c0_i32 = arith.constant 0 : i32
    %c0_i32_0 = arith.constant 0 : i32
    %c0_i32_1 = arith.constant 0 : i32
    return %arg0, %c0_i32, %c0_i32_0 : i32, i32, i32
  }
  func.func @transform_2(%arg0: i32) -> (i32, i32, i32) {
    %c0_i32 = arith.constant 0 : i32
    %c0_i32_0 = arith.constant 0 : i32
    %c0_i32_1 = arith.constant 0 : i32
    return %arg0, %c0_i32, %c0_i32_0 : i32, i32, i32
  }
}

module attributes {stable_mosaic.version = 11 : i64} {
  func.func @_mlp3_kernel(%arg0: i32, %arg1: memref<16x32xbf16, #tpu.memory_space<vmem>>, %arg2: memref<32x32xbf16, #tpu.memory_space<vmem>>, %arg3: memref<1x32xf32, #tpu.memory_space<vmem>>, %arg4: memref<32x32xbf16, #tpu.memory_space<vmem>>, %arg5: memref<1x32xf32, #tpu.memory_space<vmem>>, %arg6: memref<32x128xbf16, #tpu.memory_space<vmem>>, %arg7: memref<1x128xf32, #tpu.memory_space<vmem>>, %arg8: memref<16x128xf32, #tpu.memory_space<vmem>>) attributes {dimension_semantics = [#tpu.dimension_semantics<parallel>], iteration_bounds = array<i64: 1>, scalar_prefetch = 0 : i64, scratch_operands = 0 : i64, tpu.core_type = #tpu.core_type<tc>, window_params = [{transform_indices = @transform_0, window_bounds = array<i64: 16, 32>}, {pipeline_mode = #tpu.pipeline_mode<synchronous>, transform_indices = @transform_1, window_bounds = array<i64: 32, 32>}, {pipeline_mode = #tpu.pipeline_mode<synchronous>, transform_indices = @transform_2, window_bounds = array<i64: 1, 32>}, {pipeline_mode = #tpu.pipeline_mode<synchronous>, transform_indices = @transform_3, window_bounds = array<i64: 32, 32>}, {pipeline_mode = #tpu.pipeline_mode<synchronous>, transform_indices = @transform_4, window_bounds = array<i64: 1, 32>}, {pipeline_mode = #tpu.pipeline_mode<synchronous>, transform_indices = @transform_5, window_bounds = array<i64: 32, 128>}, {pipeline_mode = #tpu.pipeline_mode<synchronous>, transform_indices = @transform_6, window_bounds = array<i64: 1, 128>}, {transform_indices = @transform_7, window_bounds = array<i64: 16, 128>}]} {
    %c0 = arith.constant 0 : index
    %c0_0 = arith.constant 0 : index
    %0 = vector.load %arg1[%c0, %c0_0] : memref<16x32xbf16, #tpu.memory_space<vmem>>, vector<16x32xbf16>
    %c0_1 = arith.constant 0 : index
    %c0_2 = arith.constant 0 : index
    %1 = vector.load %arg2[%c0_1, %c0_2] : memref<32x32xbf16, #tpu.memory_space<vmem>>, vector<32x32xbf16>
    %cst = arith.constant dense<0.000000e+00> : vector<16x32xf32>
    %2 = tpu.matmul %0, %1, %cst {dimension_numbers = #tpu.dot_dimension_numbers<[1], [0], [0], [1], [0, 0, 1, 1], [], []>} : vector<16x32xbf16>, vector<32x32xbf16>, vector<16x32xf32> -> vector<16x32xf32>
    %c0_3 = arith.constant 0 : index
    %c0_4 = arith.constant 0 : index
    %3 = vector.load %arg3[%c0_3, %c0_4] : memref<1x32xf32, #tpu.memory_space<vmem>>, vector<1x32xf32>
    %4 = vector.broadcast %3 : vector<1x32xf32> to vector<16x32xf32>
    %5 = arith.addf %2, %4 : vector<16x32xf32>
    %cst_5 = arith.constant 0.000000e+00 : f32
    %6 = vector.broadcast %cst_5 : f32 to vector<16x32xf32>
    %7 = arith.maximumf %5, %6 : vector<16x32xf32>
    %8 = arith.truncf %7 : vector<16x32xf32> to vector<16x32xbf16>
    %c0_6 = arith.constant 0 : index
    %c0_7 = arith.constant 0 : index
    %9 = vector.load %arg4[%c0_6, %c0_7] : memref<32x32xbf16, #tpu.memory_space<vmem>>, vector<32x32xbf16>
    %cst_8 = arith.constant dense<0.000000e+00> : vector<16x32xf32>
    %10 = tpu.matmul %8, %9, %cst_8 {dimension_numbers = #tpu.dot_dimension_numbers<[1], [0], [0], [1], [0, 0, 1, 1], [], []>} : vector<16x32xbf16>, vector<32x32xbf16>, vector<16x32xf32> -> vector<16x32xf32>
    %c0_9 = arith.constant 0 : index
    %c0_10 = arith.constant 0 : index
    %11 = vector.load %arg5[%c0_9, %c0_10] : memref<1x32xf32, #tpu.memory_space<vmem>>, vector<1x32xf32>
    %12 = vector.broadcast %11 : vector<1x32xf32> to vector<16x32xf32>
    %13 = arith.addf %10, %12 : vector<16x32xf32>
    %cst_11 = arith.constant 0.000000e+00 : f32
    %14 = vector.broadcast %cst_11 : f32 to vector<16x32xf32>
    %15 = arith.maximumf %13, %14 : vector<16x32xf32>
    %16 = arith.truncf %15 : vector<16x32xf32> to vector<16x32xbf16>
    %c0_12 = arith.constant 0 : index
    %c0_13 = arith.constant 0 : index
    %17 = vector.load %arg6[%c0_12, %c0_13] : memref<32x128xbf16, #tpu.memory_space<vmem>>, vector<32x128xbf16>
    %cst_14 = arith.constant dense<0.000000e+00> : vector<16x128xf32>
    %18 = tpu.matmul %16, %17, %cst_14 {dimension_numbers = #tpu.dot_dimension_numbers<[1], [0], [0], [1], [0, 0, 1, 1], [], []>} : vector<16x32xbf16>, vector<32x128xbf16>, vector<16x128xf32> -> vector<16x128xf32>
    %c0_15 = arith.constant 0 : index
    %c0_16 = arith.constant 0 : index
    %19 = vector.load %arg7[%c0_15, %c0_16] : memref<1x128xf32, #tpu.memory_space<vmem>>, vector<1x128xf32>
    %20 = vector.broadcast %19 : vector<1x128xf32> to vector<16x128xf32>
    %21 = arith.addf %18, %20 : vector<16x128xf32>
    %c0_17 = arith.constant 0 : index
    %c0_18 = arith.constant 0 : index
    %22 = vector.load %arg8[%c0_17, %c0_18] : memref<16x128xf32, #tpu.memory_space<vmem>>, vector<16x128xf32>
    tpu.vector_store %arg8[%c0_17, %c0_18], %21 {strides = array<i32>} : memref<16x128xf32, #tpu.memory_space<vmem>>, vector<16x128xf32>,
    return
  }
  func.func @transform_0(%arg0: i32) -> (i32, i32) {
    %c0_i32 = arith.constant 0 : i32
    %c0_i32_0 = arith.constant 0 : i32
    return %arg0, %c0_i32 : i32, i32
  }
  func.func @transform_1(%arg0: i32) -> (i32, i32) {
    %c0_i32 = arith.constant 0 : i32
    %c0_i32_0 = arith.constant 0 : i32
    %c0_i32_1 = arith.constant 0 : i32
    return %c0_i32, %c0_i32_0 : i32, i32
  }
  func.func @transform_2(%arg0: i32) -> (i32, i32) {
    %c0_i32 = arith.constant 0 : i32
    %c0_i32_0 = arith.constant 0 : i32
    %c0_i32_1 = arith.constant 0 : i32
    return %c0_i32, %c0_i32_0 : i32, i32
  }
  func.func @transform_3(%arg0: i32) -> (i32, i32) {
    %c0_i32 = arith.constant 0 : i32
    %c0_i32_0 = arith.constant 0 : i32
    %c0_i32_1 = arith.constant 0 : i32
    return %c0_i32, %c0_i32_0 : i32, i32
  }
  func.func @transform_4(%arg0: i32) -> (i32, i32) {
    %c0_i32 = arith.constant 0 : i32
    %c0_i32_0 = arith.constant 0 : i32
    %c0_i32_1 = arith.constant 0 : i32
    return %c0_i32, %c0_i32_0 : i32, i32
  }
  func.func @transform_5(%arg0: i32) -> (i32, i32) {
    %c0_i32 = arith.constant 0 : i32
    %c0_i32_0 = arith.constant 0 : i32
    %c0_i32_1 = arith.constant 0 : i32
    return %c0_i32, %c0_i32_0 : i32, i32
  }
  func.func @transform_6(%arg0: i32) -> (i32, i32) {
    %c0_i32 = arith.constant 0 : i32
    %c0_i32_0 = arith.constant 0 : i32
    %c0_i32_1 = arith.constant 0 : i32
    return %c0_i32, %c0_i32_0 : i32, i32
  }
  func.func @transform_7(%arg0: i32) -> (i32, i32) {
    %c0_i32 = arith.constant 0 : i32
    %c0_i32_0 = arith.constant 0 : i32
    return %arg0, %c0_i32 : i32, i32
  }
}

</mosaic_0001>

<llo_original>
// kernel: detr_forward.3
$region0: #{detr_forward.3}
  #allocation0 [shape = 'u32[]', space=smem, size = 0x4, offset = 0x4, fixed_abs, tag = 'smem constant byte address 0x4 - core index']
  #allocation1 [shape = 'u32[144,128]{1,0:T(1,128)}', space=vmem, size = 0x12000, scoped, tag = 'internal scratch']
  %s0 = inlined_call_operand.vmem [shape: bf16[128,64], index: 0, kind: input, shape index: {}]
  %s1 = inlined_call_operand.vmem [shape: bf16[64,32], index: 1, kind: input, shape index: {}]
  %s2 = inlined_call_operand.vmem [shape: f32[1,32], index: 2, kind: input, shape index: {}]
  %s3 = inlined_call_operand.vmem [shape: f32[128,32], index: 3, kind: input, shape index: {}]
  %s4 = inlined_call_operand.vmem [shape: f32[128,32], index: 4, kind: output, shape index: {}]
  %s5 = sld [smem:[#allocation0]]
  $region26: #{detr_forward.3} parent=0
    _
  %s7 = ssub.s32 1, %s5
  %s8 = scalar_select 0, %s7, %s5
  // Predicated region
  $region2: #{detr_forward.3} parent=0 // pred_check
    _
  $region3: #{detr_forward.3} parent=0 // pred_check_branch
    %10 = sbr.rel (0) target = $region5
  $region4: #{detr_forward.3} parent=0 // pred_region
    _
  $region5: #{detr_forward.3} parent=0 // pred_fallthru
    _
  // Predicated region
  $region6: #{detr_forward.3} parent=0 // pred_check
    _
  $region7: #{detr_forward.3} parent=0 // pred_check_branch
    %12 = sbr.rel (0) target = $region9
  $region8: #{detr_forward.3} parent=0 // pred_region
    _
  $region9: #{detr_forward.3} parent=0 // pred_fallthru
    _
  // Predicated region
  $region10: #{detr_forward.3} parent=0 // pred_check
    _
  $region11: #{detr_forward.3} parent=0 // pred_check_branch
    %14 = sbr.rel (0) target = $region13
  $region12: #{detr_forward.3} parent=0 // pred_region
    _
  $region13: #{detr_forward.3} parent=0 // pred_fallthru
    _
  // Predicated region
  $region14: #{detr_forward.3} parent=0 // pred_check
    _
  $region15: #{detr_forward.3} parent=0 // pred_check_branch
    %16 = sbr.rel (0) target = $region17
  $region16: #{detr_forward.3} parent=0 // pred_region
    _
  $region17: #{detr_forward.3} parent=0 // pred_fallthru
    _
  %v18 = vld [vmem:[%s0] sm:$0xf]
  %v19 = vld [vmem:[%s0 + $0x4] sm:$0xf]
  %v20 = vld [vmem:[%s0 + $0x8] sm:$0xf]
  %v21 = vld [vmem:[%s0 + $0xc] sm:$0xf]
  %v22 = vld [vmem:[%s0 + $0x10] sm:$0xf]
  %v23 = vld [vmem:[%s0 + $0x14] sm:$0xf]
  %v24 = vld [vmem:[%s0 + $0x18] sm:$0xf]
  %v25 = vld [vmem:[%s0 + $0x1c] sm:$0xf]
  %v26 = vld [vmem:[%s0 + $0x20] sm:$0xf]
  %v27 = vld [vmem:[%s0 + $0x24] sm:$0xf]
  %v28 = vld [vmem:[%s0 + $0x28] sm:$0xf]
  %v29 = vld [vmem:[%s0 + $0x2c] sm:$0xf]
  %v30 = vld [vmem:[%s0 + $0x30] sm:$0xf]
  %v31 = vld [vmem:[%s0 + $0x34] sm:$0xf]
  %v32 = vld [vmem:[%s0 + $0x38] sm:$0xf]
  %v33 = vld [vmem:[%s0 + $0x3c] sm:$0xf]
  %v34 = vld [vmem:[%s1] sm:$0xf]
  %v35 = vld [vmem:[%s1 + $0x4] sm:$0xf]
  %v36 = vld [vmem:[%s1 + $0x8] sm:$0xf]
  %v37 = vld [vmem:[%s1 + $0xc] sm:$0xf]
  %v38 = vld [vmem:[%s1 + $0x10] sm:$0xf]
  %v39 = vld [vmem:[%s1 + $0x14] sm:$0xf]
  %v40 = vld [vmem:[%s1 + $0x18] sm:$0xf]
  %v41 = vld [vmem:[%s1 + $0x1c] sm:$0xf]
  %v42 = vld [vmem:[%s2] sm:$0x1]
  %v44 = vlaneseq
  %v45 = vshrl.u32 %v44, 7
  %v46 = vsub.s32 0, %v45
  %v47 = vrot.slane %v42, %v46
  %v65 = vunpack.c.l.b16 %v18
  %v66 = vunpack.c.l.b16 %v19
  %v67 = vunpack.c.l.b16 %v20
  %v68 = vunpack.c.l.b16 %v21
  %v69 = vunpack.c.l.b16 %v22
  %v70 = vunpack.c.l.b16 %v23
  %v71 = vunpack.c.l.b16 %v24
  %v72 = vunpack.c.l.b16 %v25
  %v73 = vunpack.c.l.b16 %v26
  %v74 = vunpack.c.l.b16 %v27
  %v75 = vunpack.c.l.b16 %v28
  %v76 = vunpack.c.l.b16 %v29
  %v77 = vunpack.c.l.b16 %v30
  %v78 = vunpack.c.l.b16 %v31
  %v79 = vunpack.c.l.b16 %v32
  %v80 = vunpack.c.l.b16 %v33
  %v81 = vpack.c.b16 %v66, %v65
  %v82 = vpack.c.b16 %v68, %v67
  %v83 = vpack.c.b16 %v70, %v69
  %v84 = vpack.c.b16 %v72, %v71
  %v85 = vpack.c.b16 %v74, %v73
  %v86 = vpack.c.b16 %v76, %v75
  %v87 = vpack.c.b16 %v78, %v77
  %v88 = vpack.c.b16 %v80, %v79
  %v97 = vunpack.c.l.b16 %v34
  %v98 = vunpack.c.l.b16 %v35
  %v99 = vunpack.c.l.b16 %v36
  %v100 = vunpack.c.l.b16 %v37
  %v101 = vunpack.c.l.b16 %v38
  %v102 = vunpack.c.l.b16 %v39
  %v103 = vunpack.c.l.b16 %v40
  %v104 = vunpack.c.l.b16 %v41
  %v105 = vpack.c.b16 %v98, %v97
  %v106 = vpack.c.b16 %v100, %v99
  %v107 = vpack.c.b16 %v102, %v101
  %v108 = vpack.c.b16 %v104, %v103
  %vm113 = vcmask 523264
  %v115 = vsel %vm113, %v81, 0
  %v118 = vsel %vm113, %v82, 0
  %v121 = vsel %vm113, %v83, 0
  %v124 = vsel %vm113, %v84, 0
  %v127 = vsel %vm113, %v85, 0
  %v130 = vsel %vm113, %v86, 0
  %v133 = vsel %vm113, %v87, 0
  %v136 = vsel %vm113, %v88, 0
  %138 = vmatprep.subr.bf16.mxu0 0
  %139 = vmatpush1.bf16.msra.mxu0 0
  %140 = vmatprep.subr.bf16.mxu0 0
  %141 = vmatpush1.bf16.msra.mxu0 0
  %142 = vmatprep.subr.bf16.mxu0 0
  %143 = vmatpush1.bf16.msra.mxu0 0
  %144 = vmatprep.subr.bf16.mxu0 0
  %145 = vmatpush1.bf16.msra.mxu0 0
  %146 = vmatprep.subr.bf16.mxu0 0
  %147 = vmatpush1.bf16.msra.mxu0 %v108
  %148 = vmatprep.subr.bf16.mxu0 0
  %149 = vmatpush1.bf16.msra.mxu0 %v107
  %150 = vmatprep.subr.bf16.mxu0 0
  %151 = vmatpush1.bf16.msra.mxu0 %v106
  %152 = vmatprep.subr.bf16.mxu0 0
  %153 = vmatpush1.bf16.msra.mxu0 %v105
  %154 = vmatprep.subr.bf16.mxu0 0
  %155 = vmatpush2.bf16.msra.mxu0 0
  %156 = vmatprep.subr.bf16.mxu0 0
  %157 = vmatpush2.bf16.msra.mxu0 0
  %158 = vmatprep.subr.bf16.mxu0 0
  %159 = vmatpush2.bf16.msra.mxu0 0
  %160 = vmatprep.subr.bf16.mxu0 0
  %161 = vmatpush2.bf16.msra.mxu0 0
  %162 = vmatprep.subr.bf16.mxu0 0
  %163 = vmatpush2.bf16.msra.mxu0 0
  %164 = vmatprep.subr.bf16.mxu0 0
  %165 = vmatpush2.bf16.msra.mxu0 0
  %166 = vmatprep.subr.bf16.mxu0 0
  %167 = vmatpush2.bf16.msra.mxu0 0
  %168 = vmatprep.subr.bf16.mxu0 0
  %169 = vmatpush2.bf16.msra.mxu0 0
  %170 = vmatprep.mubr.bf16.mxu0 0
  %171 = vmatmul.mubr.bf16.gmra.mxu0 %v115
  %v172 = vpop.f32.mrf.mxu0
  %v173 = vadd.f32 %v47, %v172
  %v174 = vpop.f32.mrf.mxu0
  %v175 = vpop.f32.mrf.mxu0
  %v176 = vadd.f32 %v47, %v175
  %v177 = vpop.f32.mrf.mxu0
  %178 = vmatprep.mubr.bf16.mxu0 0
  %179 = vmatmul.mubr.bf16.gmra.mxu0 %v118
  %v180 = vpop.f32.mrf.mxu0
  %v181 = vadd.f32 %v47, %v180
  %v182 = vpop.f32.mrf.mxu0
  %v183 = vpop.f32.mrf.mxu0
  %v184 = vadd.f32 %v47, %v183
  %v185 = vpop.f32.mrf.mxu0
  %186 = vmatprep.mubr.bf16.mxu0 0
  %187 = vmatmul.mubr.bf16.gmra.mxu0 %v121
  %v188 = vpop.f32.mrf.mxu0
  %v189 = vadd.f32 %v47, %v188
  %v190 = vpop.f32.mrf.mxu0
  %v191 = vpop.f32.mrf.mxu0
  %v192 = vadd.f32 %v47, %v191
  %v193 = vpop.f32.mrf.mxu0
  %194 = vmatprep.mubr.bf16.mxu0 0
  %195 = vmatmul.mubr.bf16.gmra.mxu0 %v124
  %v196 = vpop.f32.mrf.mxu0
  %v197 = vadd.f32 %v47, %v196
  %v198 = vpop.f32.mrf.mxu0
  %v199 = vpop.f32.mrf.mxu0
  %v200 = vadd.f32 %v47, %v199
  %v201 = vpop.f32.mrf.mxu0
  %202 = vmatprep.mubr.bf16.mxu0 0
  %203 = vmatmul.mubr.bf16.gmra.mxu0 %v127
  %v204 = vpop.f32.mrf.mxu0
  %v205 = vadd.f32 %v47, %v204
  %v206 = vpop.f32.mrf.mxu0
  %v207 = vpop.f32.mrf.mxu0
  %v208 = vadd.f32 %v47, %v207
  %v209 = vpop.f32.mrf.mxu0
  %210 = vmatprep.mubr.bf16.mxu0 0
  %211 = vmatmul.mubr.bf16.gmra.mxu0 %v130
  %v212 = vpop.f32.mrf.mxu0
  %v213 = vadd.f32 %v47, %v212
  %v214 = vpop.f32.mrf.mxu0
  %v215 = vpop.f32.mrf.mxu0
  %v216 = vadd.f32 %v47, %v215
  %v217 = vpop.f32.mrf.mxu0
  %218 = vmatprep.mubr.bf16.mxu0 0
  %219 = vmatmul.mubr.bf16.gmra.mxu0 %v133
  %v220 = vpop.f32.mrf.mxu0
  %v221 = vadd.f32 %v47, %v220
  %v222 = vpop.f32.mrf.mxu0
  %v223 = vpop.f32.mrf.mxu0
  %v224 = vadd.f32 %v47, %v223
  %v225 = vpop.f32.mrf.mxu0
  %226 = vmatprep.mubr.bf16.mxu0 0
  %227 = vmatmul.mubr.bf16.gmra.mxu0 %v136
  %v228 = vpop.f32.mrf.mxu0
  %v229 = vadd.f32 %v47, %v228
  %v230 = vpop.f32.mrf.mxu0
  %v231 = vpop.f32.mrf.mxu0
  %v232 = vadd.f32 %v47, %v231
  %v233 = vpop.f32.mrf.mxu0
  %234 = vdwg.mxu0
  %v235 = vld [vmem:[%s3] sm:$0xff]
  %v236 = vld [vmem:[%s3 + $0x8] sm:$0xff]
  %v237 = vld [vmem:[%s3 + $0x10] sm:$0xff]
  %v238 = vld [vmem:[%s3 + $0x18] sm:$0xff]
  %v239 = vld [vmem:[%s3 + $0x20] sm:$0xff]
  %v240 = vld [vmem:[%s3 + $0x28] sm:$0xff]
  %v241 = vld [vmem:[%s3 + $0x30] sm:$0xff]
  %v242 = vld [vmem:[%s3 + $0x38] sm:$0xff]
  %v243 = vld [vmem:[%s3 + $0x40] sm:$0xff]
  %v244 = vld [vmem:[%s3 + $0x48] sm:$0xff]
  %v245 = vld [vmem:[%s3 + $0x50] sm:$0xff]
  %v246 = vld [vmem:[%s3 + $0x58] sm:$0xff]
  %v247 = vld [vmem:[%s3 + $0x60] sm:$0xff]
  %v248 = vld [vmem:[%s3 + $0x68] sm:$0xff]
  %v249 = vld [vmem:[%s3 + $0x70] sm:$0xff]
  %v250 = vld [vmem:[%s3 + $0x78] sm:$0xff]
  %v251 = vadd.f32 %v173, %v235
  %v252 = vadd.f32 %v176, %v236
  %v253 = vadd.f32 %v181, %v237
  %v254 = vadd.f32 %v184, %v238
  %v255 = vadd.f32 %v189, %v239
  %v256 = vadd.f32 %v192, %v240
  %v257 = vadd.f32 %v197, %v241
  %v258 = vadd.f32 %v200, %v242
  %v259 = vadd.f32 %v205, %v243
  %v260 = vadd.f32 %v208, %v244
  %v261 = vadd.f32 %v213, %v245
  %v262 = vadd.f32 %v216, %v246
  %v263 = vadd.f32 %v221, %v247
  %v264 = vadd.f32 %v224, %v248
  %v265 = vadd.f32 %v229, %v249
  %v266 = vadd.f32 %v232, %v250
  %vm267 = vcmask 261120
  %268 = vst.msk [vmem:[%s4] sm:$0xff] %vm267, %v251
  %269 = vst.msk [vmem:[%s4 + $0x8] sm:$0xff] %vm267, %v252
  %270 = vst.msk [vmem:[%s4 + $0x10] sm:$0xff] %vm267, %v253
  %271 = vst.msk [vmem:[%s4 + $0x18] sm:$0xff] %vm267, %v254
  %272 = vst.msk [vmem:[%s4 + $0x20] sm:$0xff] %vm267, %v255
  %273 = vst.msk [vmem:[%s4 + $0x28] sm:$0xff] %vm267, %v256
  %274 = vst.msk [vmem:[%s4 + $0x30] sm:$0xff] %vm267, %v257
  %275 = vst.msk [vmem:[%s4 + $0x38] sm:$0xff] %vm267, %v258
  %276 = vst.msk [vmem:[%s4 + $0x40] sm:$0xff] %vm267, %v259
  %277 = vst.msk [vmem:[%s4 + $0x48] sm:$0xff] %vm267, %v260
  %278 = vst.msk [vmem:[%s4 + $0x50] sm:$0xff] %vm267, %v261
  %279 = vst.msk [vmem:[%s4 + $0x58] sm:$0xff] %vm267, %v262
  %280 = vst.msk [vmem:[%s4 + $0x60] sm:$0xff] %vm267, %v263
  %281 = vst.msk [vmem:[%s4 + $0x68] sm:$0xff] %vm267, %v264
  %282 = vst.msk [vmem:[%s4 + $0x70] sm:$0xff] %vm267, %v265
  %283 = vst.msk [vmem:[%s4 + $0x78] sm:$0xff] %vm267, %v266
  // Predicated region
  $region18: #{detr_forward.3} parent=0 // pred_check
    _
  $region19: #{detr_forward.3} parent=0 // pred_check_branch
    %285 = sbr.rel (0) target = $region21
  $region20: #{detr_forward.3} parent=0 // pred_region
    _
  $region21: #{detr_forward.3} parent=0 // pred_fallthru
    _
  // Predicated region
  $region22: #{detr_forward.3} parent=0 // pred_check
    _
  $region23: #{detr_forward.3} parent=0 // pred_check_branch
    %287 = sbr.rel (0) target = $region25
  $region24: #{detr_forward.3} parent=0 // pred_region
    _
  $region25: #{detr_forward.3} parent=0 // pred_fallthru
    _

// kernel: detr_forward.4
$region0: #{detr_forward.4}
  #allocation0 [shape = 'u32[]', space=smem, size = 0x4, offset = 0x4, fixed_abs, tag = 'smem constant byte address 0x4 - core index']
  #allocation1 [shape = 'u32[144,128]{1,0:T(1,128)}', space=vmem, size = 0x12000, scoped, tag = 'internal scratch']
  %s0 = inlined_call_operand.vmem [shape: bf16[8,32], index: 0, kind: input, shape index: {}]
  %s1 = inlined_call_operand.vmem [shape: bf16[2,64,32], index: 1, kind: input, shape index: {}]
  %s2 = inlined_call_operand.vmem [shape: f32[2,8,32], index: 2, kind: output, shape index: {}]
  %s3 = sld [smem:[#allocation0]]
  $region41: #{detr_forward.4} parent=0
    _
  %s5 = ssub.s32 1, %s3
  %s6 = scalar_select 0, %s5, %s3
  loop: start=0, step=1, limit=4
  $region2: #{detr_forward.4} parent=0 // loop_pre_header
    _
  $region3: #{detr_forward.4} parent=0 // loop_header
    %s8 = sphi 0, %s12
    %p9 = scmp.ge.s32.totalorder %s8, 4
    %s16 = sphi 0, %s16
    %s18 = sphi 0, %s16
    %s19 = sphi 0, %s18
    %s33 = sphi 0, %s19
    %s39 = sphi 0, %s41
    %s42 = sphi 0, %s39
    %s43 = sphi 0, %s42
    %s59 = sphi 0, %s43
    %s65 = sphi 0, %s67
    %s68 = sphi 0, %s65
    %s69 = sphi 0, %s68
    %s85 = sphi 0, %s69
  $region4: #{detr_forward.4} parent=0 // loop_header_branch
    %11 = sbr.rel (%p9) target = $region8
  $region5: #{detr_forward.4} parent=0 // loop_body
    %s13 = ssub.s32 %s8, 1
    %s14 = ssub.s32 %s8, 2
    %s15 = sadd.s32 %s8, 1
    %s17 = sadd.s32 %s16, 1
    %p20 = scmp.eq.s32.totalorder %s8, 1
    %p21 = scmp.ne.s32.totalorder %s16, %s18
    %p22 = scmp.eq.s32.totalorder %s8, 0
    %p23 = por %p21, %p22
    %p24 = scmp.ne.s32.totalorder %s16, %s18
    %p25 = scmp.eq.s32.totalorder %s13, 1
    %p26 = por %p24, %p25
    %p27 = scmp.ne.s32.totalorder %s18, %s19
    %p28 = scmp.eq.s32.totalorder %s13, 0
    %p29 = por %p27, %p28
    %p30 = scmp.ne.s32.totalorder %s18, %s19
    %p31 = scmp.eq.s32.totalorder %s14, 1
    %p32 = por %p30, %p31
    %p34 = scmp.ne.s32.totalorder %s19, %s33
    %p35 = scmp.eq.s32.totalorder %s14, 0
    %p36 = por %p34, %p35
    %s37 = ssub.s32 %s8, %s15
    %p38 = scmp.eq.s32.totalorder %s37, 0
    %s40 = sadd.s32 %s39, 1
    %s41 = scalar_select %p38, %s39, %s40
    %p44 = pneg %p38
    %p45 = scmp.eq.s32.totalorder %s8, 1
    %p46 = por %p44, %p45
    %p47 = scmp.ne.s32.totalorder %s39, %s42
    %p48 = scmp.eq.s32.totalorder %s8, 0
    %p49 = por %p47, %p48
    %p50 = scmp.ne.s32.totalorder %s39, %s42
    %p51 = scmp.eq.s32.totalorder %s13, 1
    %p52 = por %p50, %p51
    %p53 = scmp.ne.s32.totalorder %s42, %s43
    %p54 = scmp.eq.s32.totalorder %s13, 0
    %p55 = por %p53, %p54
    %p56 = scmp.ne.s32.totalorder %s42, %s43
    %p57 = scmp.eq.s32.totalorder %s14, 1
    %p58 = por %p56, %p57
    %p60 = scmp.ne.s32.totalorder %s43, %s59
    %p61 = scmp.eq.s32.totalorder %s14, 0
    %p62 = por %p60, %p61
    %s63 = ssub.s32 %s8, %s15
    %p64 = scmp.eq.s32.totalorder %s63, 0
    %s66 = sadd.s32 %s65, 1
    %s67 = scalar_select %p64, %s65, %s66
    %p70 = pneg %p64
    %p71 = scmp.eq.s32.totalorder %s8, 1
    %p72 = por %p70, %p71
    %p73 = scmp.ne.s32.totalorder %s65, %s68
    %p74 = scmp.eq.s32.totalorder %s8, 0
    %p75 = por %p73, %p74
    %p76 = scmp.ne.s32.totalorder %s65, %s68
    %p77 = scmp.eq.s32.totalorder %s13, 1
    %p78 = por %p76, %p77
    %p79 = scmp.ne.s32.totalorder %s68, %s69
    %p80 = scmp.eq.s32.totalorder %s13, 0
    %p81 = por %p79, %p80
    %p82 = scmp.ne.s32.totalorder %s68, %s69
    %p83 = scmp.eq.s32.totalorder %s14, 1
    %p84 = por %p82, %p83
    %p86 = scmp.ne.s32.totalorder %s69, %s85
    %p87 = scmp.eq.s32.totalorder %s14, 0
    %p88 = por %p86, %p87
    %p89 = scmp.le.s32.totalorder 1, %s8
    %p90 = scmp.lt.s32.totalorder %s8, 3
    %p91 = pnand %p89, %p90
    %p92 = pneg %p91
    // Predicated region
    $region9: #{detr_forward.4} parent=5 // pred_check
      _
    $region10: #{detr_forward.4} parent=5 // pred_check_branch
      %94 = sbr.rel (%p91) target = $region12
    $region11: #{detr_forward.4} parent=5 // pred_region
      %s95 = ssub.s32 %s8, 1
      // Predicated region
      $region13: #{detr_forward.4} parent=11 // pred_check
        %p96 = pneg %p29
      $region14: #{detr_forward.4} parent=11 // pred_check_branch
        %98 = sbr.rel (%p96) target = $region16
      $region15: #{detr_forward.4} parent=11 // pred_region
        _
      $region16: #{detr_forward.4} parent=11 // pred_fallthru
        _
    $region12: #{detr_forward.4} parent=5 // pred_fallthru
      _
    %p99 = scmp.lt.s32.totalorder %s8, 2
    // Predicated region
    $region17: #{detr_forward.4} parent=5 // pred_check
      %p100 = pneg %p99
    $region18: #{detr_forward.4} parent=5 // pred_check_branch
      %102 = sbr.rel (%p100) target = $region20
    $region19: #{detr_forward.4} parent=5 // pred_region
      // Predicated region
      $region21: #{detr_forward.4} parent=19 // pred_check
        %p103 = pneg %p49
      $region22: #{detr_forward.4} parent=19 // pred_check_branch
        %105 = sbr.rel (%p103) target = $region24
      $region23: #{detr_forward.4} parent=19 // pred_region
        %p106 = scmp.lt.s32.totalorder %s8, 1
        %s107 = scalar_select %p106, %s8, 1
        %s108 = smul.addr %s107, 8
        %s109 = smul.addr %s108, 4
        %s110 = scalar_lea.vmem %s1, %s109
      $region24: #{detr_forward.4} parent=19 // pred_fallthru
        _
    $region20: #{detr_forward.4} parent=5 // pred_fallthru
      _
    %p111 = scmp.le.s32.totalorder 1, %s8
    %p112 = scmp.lt.s32.totalorder %s8, 3
    %p113 = pnand %p111, %p112
    %p114 = pneg %p113
    // Predicated region
    $region25: #{detr_forward.4} parent=5 // pred_check
      _
    $region26: #{detr_forward.4} parent=5 // pred_check_branch
      %116 = sbr.rel (%p113) target = $region28
    $region27: #{detr_forward.4} parent=5 // pred_region
      %s117 = ssub.s32 %s8, 1
      %p118 = pneg %p29
      %p119 = pneg %p26
      %p120 = scmp.lt.s32.totalorder %s13, 1
      %s121 = scalar_select %p120, %s13, 1
      %s122 = smul.addr %s121, 8
      %s123 = smul.addr %s122, 4
      %s124 = scalar_lea.vmem %s1, %s123
      %p125 = pneg %p55
      %p126 = pneg %p52
      %p127 = pneg %p81
      %p128 = pneg %p78
      %p129 = scmp.lt.s32.totalorder %s13, 1
      %s130 = scalar_select %p129, %s13, 1
      %s131 = smul.addr %s130, 8
      %s132 = scalar_lea.vmem %s2, %s131
      %p133 = scmp.lt.s32.totalorder %s13, 1
      %s134 = scalar_select %p133, %s13, 1
      %s135 = smul.addr %s134, 8
      %s136 = smul.addr %s135, 4
      %s137 = scalar_lea.vmem %s1, %s136
      %p138 = scmp.lt.s32.totalorder %s13, 1
      %s139 = scalar_select %p138, %s13, 1
      %s140 = smul.addr %s139, 8
      %s141 = scalar_lea.vmem %s2, %s140
      %v143 = vld [vmem:[%s0] sm:$0xf]
      %v144 = vld [vmem:[%s137] sm:$0xf]
      %v145 = vld [vmem:[%s137 + $0x4] sm:$0xf]
      %v146 = vld [vmem:[%s137 + $0x8] sm:$0xf]
      %v147 = vld [vmem:[%s137 + $0xc] sm:$0xf]
      %v148 = vld [vmem:[%s137 + $0x10] sm:$0xf]
      %v149 = vld [vmem:[%s137 + $0x14] sm:$0xf]
      %v150 = vld [vmem:[%s137 + $0x18] sm:$0xf]
      %v151 = vld [vmem:[%s137 + $0x1c] sm:$0xf]
      %v160 = vunpack.c.l.b16 %v144
      %v161 = vunpack.c.l.b16 %v145
      %v162 = vunpack.c.l.b16 %v146
      %v163 = vunpack.c.l.b16 %v147
      %v164 = vunpack.c.l.b16 %v148
      %v165 = vunpack.c.l.b16 %v149
      %v166 = vunpack.c.l.b16 %v150
      %v167 = vunpack.c.l.b16 %v151
      %v168 = vpack.c.b16 %v161, %v160
      %v169 = vpack.c.b16 %v163, %v162
      %v170 = vpack.c.b16 %v165, %v164
      %v171 = vpack.c.b16 %v167, %v166
      %vm172 = vcmask 261120
      %v174 = vsel %vm172, %v143, 0
      %v177 = vsel %vm172, %v168, 0
      %v180 = vsel %vm172, %v169, 0
      %v183 = vsel %vm172, %v170, 0
      %v186 = vsel %vm172, %v171, 0
      %188 = vmatprep.subr.bf16.mxu0 0
      %189 = vmatpush1.bf16.xpose.msra.mxu0 0
      %190 = vmatprep.subr.bf16.mxu0 0
      %191 = vmatpush1.bf16.xpose.msra.mxu0 0
      %192 = vmatprep.subr.bf16.mxu0 0
      %193 = vmatpush1.bf16.xpose.msra.mxu0 0
      %194 = vmatprep.subr.bf16.mxu0 0
      %195 = vmatpush1.bf16.xpose.msra.mxu0 0
      %196 = vmatprep.subr.bf16.mxu0 0
      %197 = vmatpush1.bf16.xpose.msra.mxu0 %v186
      %198 = vmatprep.subr.bf16.mxu0 0
      %199 = vmatpush1.bf16.xpose.msra.mxu0 %v183
      %200 = vmatprep.subr.bf16.mxu0 0
      %201 = vmatpush1.bf16.xpose.msra.mxu0 %v180
      %202 = vmatprep.subr.bf16.mxu0 0
      %203 = vmatpush1.bf16.xpose.msra.mxu0 %v177
      %204 = vmatprep.subr.bf16.mxu0 0
      %205 = vmatpush2.bf16.xpose.msra.mxu0 0
      %206 = vmatprep.subr.bf16.mxu0 0
      %207 = vmatpush2.bf16.xpose.msra.mxu0 0
      %208 = vmatprep.subr.bf16.mxu0 0
      %209 = vmatpush2.bf16.xpose.msra.mxu0 0
      %210 = vmatprep.subr.bf16.mxu0 0
      %211 = vmatpush2.bf16.xpose.msra.mxu0 0
      %212 = vmatprep.subr.bf16.mxu0 0
      %213 = vmatpush2.bf16.xpose.msra.mxu0 0
      %214 = vmatprep.subr.bf16.mxu0 0
      %215 = vmatpush2.bf16.xpose.msra.mxu0 0
      %216 = vmatprep.subr.bf16.mxu0 0
      %217 = vmatpush2.bf16.xpose.msra.mxu0 0
      %218 = vmatprep.subr.bf16.mxu0 0
      %219 = vmatpush2.bf16.xpose.msra.mxu0 0
      %220 = vmatprep.mubr.bf16.mxu0 0
      %221 = vmatmul.mubr.bf16.gmra.mxu0 %v174
      %v222 = vpop.f32.mrf.mxu0
      %v223 = vadd.f32 0.0, %v222
      %v224 = vpop.f32.mrf.mxu0
      %v225 = vpop.f32.mrf.mxu0
      %v226 = vpop.f32.mrf.mxu0
      %227 = vdwg.mxu0
      %v228 = vmul.f32 %v223, 0.17677669
      %vm229 = vcmask 523264
      %v230 = vsel %vm229, %v228, -inf
      %231 = vmax.xlane.f32.xlu0 %v230
      %v232 = vpop.xlane.xlu0 %231
      %v233 = vsub.f32 %v228, %v232
      %v234 = vmul.f32 %v233, 1.442695
      %v235 = vpow.pop %v234
      %v236 = vsel %vm229, %v235, 0.0
      %237 = vadd.xlane.f32.xlu0 %v236
      %v238 = vpop.xlane.xlu0 %237
      %v239 = vrcp.pop %v238
      %v240 = vmul.f32 %v235, %v239
      %v241 = vpack.c.bf16 %v240, %v240
      %v247 = vsel %vm229, %v241, 0
      %249 = vmatprep.subr.bf16.mxu0 0
      %250 = vmatpush1.bf16.msra.mxu0 0
      %251 = vmatprep.subr.bf16.mxu0 0
      %252 = vmatpush1.bf16.msra.mxu0 0
      %253 = vmatprep.subr.bf16.mxu0 0
      %254 = vmatpush1.bf16.msra.mxu0 0
      %255 = vmatprep.subr.bf16.mxu0 0
      %256 = vmatpush1.bf16.msra.mxu0 0
      %257 = vmatprep.subr.bf16.mxu0 0
      %258 = vmatpush1.bf16.msra.mxu0 %v171
      %259 = vmatprep.subr.bf16.mxu0 0
      %260 = vmatpush1.bf16.msra.mxu0 %v170
      %261 = vmatprep.subr.bf16.mxu0 0
      %262 = vmatpush1.bf16.msra.mxu0 %v169
      %263 = vmatprep.subr.bf16.mxu0 0
      %264 = vmatpush1.bf16.msra.mxu0 %v168
      %265 = vmatprep.subr.bf16.mxu0 0
      %266 = vmatpush2.bf16.msra.mxu0 0
      %267 = vmatprep.subr.bf16.mxu0 0
      %268 = vmatpush2.bf16.msra.mxu0 0
      %269 = vmatprep.subr.bf16.mxu0 0
      %270 = vmatpush2.bf16.msra.mxu0 0
      %271 = vmatprep.subr.bf16.mxu0 0
      %272 = vmatpush2.bf16.msra.mxu0 0
      %273 = vmatprep.subr.bf16.mxu0 0
      %274 = vmatpush2.bf16.msra.mxu0 0
      %275 = vmatprep.subr.bf16.mxu0 0
      %276 = vmatpush2.bf16.msra.mxu0 0
      %277 = vmatprep.subr.bf16.mxu0 0
      %278 = vmatpush2.bf16.msra.mxu0 0
      %279 = vmatprep.subr.bf16.mxu0 0
      %280 = vmatpush2.bf16.msra.mxu0 0
      %281 = vmatprep.mubr.bf16.mxu0 0
      %282 = vmatmul.mubr.bf16.gmra.mxu0 %v247
      %v283 = vpop.f32.mrf.mxu0
      %v284 = vadd.f32 0.0, %v283
      %v285 = vpop.f32.mrf.mxu0
      %v286 = vpop.f32.mrf.mxu0
      %v287 = vpop.f32.mrf.mxu0
      %288 = vdwg.mxu0
      %289 = vst.msk [vmem:[%s141] sm:$0xff] %vm172, %v284
      %p290 = scmp.lt.s32.totalorder %s13, 1
      %s291 = scalar_select %p290, %s13, 1
      %s292 = smul.addr %s291, 8
      %s293 = scalar_lea.vmem %s2, %s292
      // Predicated region
      $region29: #{detr_forward.4} parent=27 // pred_check
        %p294 = pneg %p78
      $region30: #{detr_forward.4} parent=27 // pred_check_branch
        %296 = sbr.rel (%p294) target = $region32
      $region31: #{detr_forward.4} parent=27 // pred_region
        _
      $region32: #{detr_forward.4} parent=27 // pred_fallthru
        _
    $region28: #{detr_forward.4} parent=5 // pred_fallthru
      _
    %p297 = scmp.le.s32.totalorder 2, %s8
    // Predicated region
    $region33: #{detr_forward.4} parent=5 // pred_check
      %p298 = pneg %p297
    $region34: #{detr_forward.4} parent=5 // pred_check_branch
      %300 = sbr.rel (%p298) target = $region36
    $region35: #{detr_forward.4} parent=5 // pred_region
      %s301 = ssub.s32 %s8, 2
      // Predicated region
      $region37: #{detr_forward.4} parent=35 // pred_check
        %p302 = pneg %p84
      $region38: #{detr_forward.4} parent=35 // pred_check_branch
        %304 = sbr.rel (%p302) target = $region40
      $region39: #{detr_forward.4} parent=35 // pred_region
        %p305 = scmp.lt.s32.totalorder %s14, 1
        %s306 = scalar_select %p305, %s14, 1
        %s307 = smul.addr %s306, 8
        %s308 = scalar_lea.vmem %s2, %s307
      $region40: #{detr_forward.4} parent=35 // pred_fallthru
        _
    $region36: #{detr_forward.4} parent=5 // pred_fallthru
      _
  $region6: #{detr_forward.4} parent=0 // loop_footer
    %s12 = sadd.s32 1, %s8
  $region7: #{detr_forward.4} parent=0 // loop_footer_branch
    %7 = sbr.rel target = $region3
  $region8: #{detr_forward.4} parent=0 // loop_exit
    _

// kernel: detr_forward.5
$region0: #{detr_forward.5}
  #allocation0 [shape = 'u32[]', space=smem, size = 0x4, offset = 0x4, fixed_abs, tag = 'smem constant byte address 0x4 - core index']
  #allocation1 [shape = 'u32[144,128]{1,0:T(1,128)}', space=vmem, size = 0x12000, scoped, tag = 'internal scratch']
  %s0 = inlined_call_operand.vmem [shape: bf16[16,32], index: 0, kind: input, shape index: {}]
  %s1 = inlined_call_operand.vmem [shape: bf16[32,32], index: 1, kind: input, shape index: {}]
  %s2 = inlined_call_operand.vmem [shape: f32[1,32], index: 2, kind: input, shape index: {}]
  %s3 = inlined_call_operand.vmem [shape: bf16[32,32], index: 3, kind: input, shape index: {}]
  %s4 = inlined_call_operand.vmem [shape: f32[1,32], index: 4, kind: input, shape index: {}]
  %s5 = inlined_call_operand.vmem [shape: bf16[32,128], index: 5, kind: input, shape index: {}]
  %s6 = inlined_call_operand.vmem [shape: f32[1,128], index: 6, kind: input, shape index: {}]
  %s7 = inlined_call_operand.vmem [shape: f32[16,128], index: 7, kind: output, shape index: {}]
  %s8 = sld [smem:[#allocation0]]
  $region38: #{detr_forward.5} parent=0
    _
  %s10 = ssub.s32 1, %s8
  %s11 = scalar_select 0, %s10, %s8
  // Predicated region
  $region2: #{detr_forward.5} parent=0 // pred_check
    _
  $region3: #{detr_forward.5} parent=0 // pred_check_branch
    %13 = sbr.rel (0) target = $region5
  $region4: #{detr_forward.5} parent=0 // pred_region
    _
  $region5: #{detr_forward.5} parent=0 // pred_fallthru
    _
  // Predicated region
  $region6: #{detr_forward.5} parent=0 // pred_check
    _
  $region7: #{detr_forward.5} parent=0 // pred_check_branch
    %15 = sbr.rel (0) target = $region9
  $region8: #{detr_forward.5} parent=0 // pred_region
    _
  $region9: #{detr_forward.5} parent=0 // pred_fallthru
    _
  // Predicated region
  $region10: #{detr_forward.5} parent=0 // pred_check
    _
  $region11: #{detr_forward.5} parent=0 // pred_check_branch
    %17 = sbr.rel (0) target = $region13
  $region12: #{detr_forward.5} parent=0 // pred_region
    _
  $region13: #{detr_forward.5} parent=0 // pred_fallthru
    _
  // Predicated region
  $region14: #{detr_forward.5} parent=0 // pred_check
    _
  $region15: #{detr_forward.5} parent=0 // pred_check_branch
    %19 = sbr.rel (0) target = $region17
  $region16: #{detr_forward.5} parent=0 // pred_region
    _
  $region17: #{detr_forward.5} parent=0 // pred_fallthru
    _
  // Predicated region
  $region18: #{detr_forward.5} parent=0 // pred_check
    _
  $region19: #{detr_forward.5} parent=0 // pred_check_branch
    %21 = sbr.rel (0) target = $region21
  $region20: #{detr_forward.5} parent=0 // pred_region
    _
  $region21: #{detr_forward.5} parent=0 // pred_fallthru
    _
  // Predicated region
  $region22: #{detr_forward.5} parent=0 // pred_check
    _
  $region23: #{detr_forward.5} parent=0 // pred_check_branch
    %23 = sbr.rel (0) target = $region25
  $region24: #{detr_forward.5} parent=0 // pred_region
    _
  $region25: #{detr_forward.5} parent=0 // pred_fallthru
    _
  // Predicated region
  $region26: #{detr_forward.5} parent=0 // pred_check
    _
  $region27: #{detr_forward.5} parent=0 // pred_check_branch
    %25 = sbr.rel (0) target = $region29
  $region28: #{detr_forward.5} parent=0 // pred_region
    _
  $region29: #{detr_forward.5} parent=0 // pred_fallthru
    _
  %v27 = vld [vmem:[%s0] sm:$0xf]
  %v28 = vld [vmem:[%s0 + $0x4] sm:$0xf]
  %v29 = vld [vmem:[%s1] sm:$0xf]
  %v30 = vld [vmem:[%s1 + $0x4] sm:$0xf]
  %v31 = vld [vmem:[%s1 + $0x8] sm:$0xf]
  %v32 = vld [vmem:[%s1 + $0xc] sm:$0xf]
  %v33 = vld [vmem:[%s2] sm:$0x1]
  %v35 = vlaneseq
  %v36 = vshrl.u32 %v35, 7
  %v37 = vsub.s32 0, %v36
  %v38 = vrot.slane %v33, %v37
  %v42 = vunpack.c.l.b16 %v27
  %v43 = vunpack.c.l.b16 %v28
  %v44 = vpack.c.b16 %v43, %v42
  %v49 = vunpack.c.l.b16 %v29
  %v50 = vunpack.c.l.b16 %v30
  %v51 = vunpack.c.l.b16 %v31
  %v52 = vunpack.c.l.b16 %v32
  %v53 = vpack.c.b16 %v50, %v49
  %v54 = vpack.c.b16 %v52, %v51
  %vm57 = vcmask 261120
  %v59 = vsel %vm57, %v44, 0
  %61 = vmatprep.subr.bf16.mxu0 0
  %62 = vmatpush1.bf16.msra.mxu0 0
  %63 = vmatprep.subr.bf16.mxu0 0
  %64 = vmatpush1.bf16.msra.mxu0 0
  %65 = vmatprep.subr.bf16.mxu0 0
  %66 = vmatpush1.bf16.msra.mxu0 0
  %67 = vmatprep.subr.bf16.mxu0 0
  %68 = vmatpush1.bf16.msra.mxu0 0
  %69 = vmatprep.subr.bf16.mxu0 0
  %70 = vmatpush1.bf16.msra.mxu0 0
  %71 = vmatprep.subr.bf16.mxu0 0
  %72 = vmatpush1.bf16.msra.mxu0 0
  %73 = vmatprep.subr.bf16.mxu0 0
  %74 = vmatpush1.bf16.msra.mxu0 %v54
  %75 = vmatprep.subr.bf16.mxu0 0
  %76 = vmatpush1.bf16.msra.mxu0 %v53
  %77 = vmatprep.subr.bf16.mxu0 0
  %78 = vmatpush2.bf16.msra.mxu0 0
  %79 = vmatprep.subr.bf16.mxu0 0
  %80 = vmatpush2.bf16.msra.mxu0 0
  %81 = vmatprep.subr.bf16.mxu0 0
  %82 = vmatpush2.bf16.msra.mxu0 0
  %83 = vmatprep.subr.bf16.mxu0 0
  %84 = vmatpush2.bf16.msra.mxu0 0
  %85 = vmatprep.subr.bf16.mxu0 0
  %86 = vmatpush2.bf16.msra.mxu0 0
  %87 = vmatprep.subr.bf16.mxu0 0
  %88 = vmatpush2.bf16.msra.mxu0 0
  %89 = vmatprep.subr.bf16.mxu0 0
  %90 = vmatpush2.bf16.msra.mxu0 0
  %91 = vmatprep.subr.bf16.mxu0 0
  %92 = vmatpush2.bf16.msra.mxu0 0
  %93 = vmatprep.mubr.bf16.mxu0 0
  %94 = vmatmul.mubr.bf16.gmra.mxu0 %v59
  %v95 = vpop.f32.mrf.mxu0
  %v96 = vadd.f32 %v38, %v95
  %v97 = vpop.f32.mrf.mxu0
  %v98 = vpop.f32.mrf.mxu0
  %v99 = vadd.f32 %v38, %v98
  %v100 = vpop.f32.mrf.mxu0
  %101 = vdwg.mxu0
  %v102 = vmax.f32 %v96, 0.0
  %v103 = vmax.f32 %v99, 0.0
  %v104 = vpack.c.bf16 %v103, %v102
  %v105 = vld [vmem:[%s3] sm:$0xf]
  %v106 = vld [vmem:[%s3 + $0x4] sm:$0xf]
  %v107 = vld [vmem:[%s3 + $0x8] sm:$0xf]
  %v108 = vld [vmem:[%s3 + $0xc] sm:$0xf]
  %v109 = vld [vmem:[%s4] sm:$0x1]
  %v111 = vlaneseq
  %v112 = vshrl.u32 %v111, 7
  %v113 = vsub.s32 0, %v112
  %v114 = vrot.slane %v109, %v113
  %v120 = vunpack.c.l.b16 %v105
  %v121 = vunpack.c.l.b16 %v106
  %v122 = vunpack.c.l.b16 %v107
  %v123 = vunpack.c.l.b16 %v108
  %v124 = vpack.c.b16 %v121, %v120
  %v125 = vpack.c.b16 %v123, %v122
  %v129 = vsel %vm57, %v104, 0
  %131 = vmatprep.subr.bf16.mxu0 0
  %132 = vmatpush1.bf16.msra.mxu0 0
  %133 = vmatprep.subr.bf16.mxu0 0
  %134 = vmatpush1.bf16.msra.mxu0 0
  %135 = vmatprep.subr.bf16.mxu0 0
  %136 = vmatpush1.bf16.msra.mxu0 0
  %137 = vmatprep.subr.bf16.mxu0 0
  %138 = vmatpush1.bf16.msra.mxu0 0
  %139 = vmatprep.subr.bf16.mxu0 0
  %140 = vmatpush1.bf16.msra.mxu0 0
  %141 = vmatprep.subr.bf16.mxu0 0
  %142 = vmatpush1.bf16.msra.mxu0 0
  %143 = vmatprep.subr.bf16.mxu0 0
  %144 = vmatpush1.bf16.msra.mxu0 %v125
  %145 = vmatprep.subr.bf16.mxu0 0
  %146 = vmatpush1.bf16.msra.mxu0 %v124
  %147 = vmatprep.subr.bf16.mxu0 0
  %148 = vmatpush2.bf16.msra.mxu0 0
  %149 = vmatprep.subr.bf16.mxu0 0
  %150 = vmatpush2.bf16.msra.mxu0 0
  %151 = vmatprep.subr.bf16.mxu0 0
  %152 = vmatpush2.bf16.msra.mxu0 0
  %153 = vmatprep.subr.bf16.mxu0 0
  %154 = vmatpush2.bf16.msra.mxu0 0
  %155 = vmatprep.subr.bf16.mxu0 0
  %156 = vmatpush2.bf16.msra.mxu0 0
  %157 = vmatprep.subr.bf16.mxu0 0
  %158 = vmatpush2.bf16.msra.mxu0 0
  %159 = vmatprep.subr.bf16.mxu0 0
  %160 = vmatpush2.bf16.msra.mxu0 0
  %161 = vmatprep.subr.bf16.mxu0 0
  %162 = vmatpush2.bf16.msra.mxu0 0
  %163 = vmatprep.mubr.bf16.mxu0 0
  %164 = vmatmul.mubr.bf16.gmra.mxu0 %v129
  %v165 = vpop.f32.mrf.mxu0
  %v166 = vadd.f32 %v114, %v165
  %v167 = vpop.f32.mrf.mxu0
  %v168 = vpop.f32.mrf.mxu0
  %v169 = vadd.f32 %v114, %v168
  %v170 = vpop.f32.mrf.mxu0
  %171 = vdwg.mxu0
  %v172 = vmax.f32 %v166, 0.0
  %v173 = vmax.f32 %v169, 0.0
  %v174 = vpack.c.bf16 %v173, %v172
  %v175 = vld [vmem:[%s5] sm:$0xf]
  %v176 = vld [vmem:[%s5 + $0x4] sm:$0xf]
  %v177 = vld [vmem:[%s5 + $0x8] sm:$0xf]
  %v178 = vld [vmem:[%s5 + $0xc] sm:$0xf]
  %v179 = vld [vmem:[%s6] sm:$0x1]
  %v181 = vlaneseq
  %v182 = vshrl.u32 %v181, 7
  %v183 = vsub.s32 0, %v182
  %v184 = vrot.slane %v179, %v183
  %v190 = vunpack.c.l.b16 %v175
  %v191 = vunpack.c.l.b16 %v176
  %v192 = vunpack.c.l.b16 %v177
  %v193 = vunpack.c.l.b16 %v178
  %v194 = vpack.c.b16 %v191, %v190
  %v195 = vpack.c.b16 %v193, %v192
  %v199 = vsel %vm57, %v174, 0
  %201 = vmatprep.subr.bf16.mxu0 0
  %202 = vmatpush1.bf16.msra.mxu0 0
  %203 = vmatprep.subr.bf16.mxu0 0
  %204 = vmatpush1.bf16.msra.mxu0 0
  %205 = vmatprep.subr.bf16.mxu0 0
  %206 = vmatpush1.bf16.msra.mxu0 0
  %207 = vmatprep.subr.bf16.mxu0 0
  %208 = vmatpush1.bf16.msra.mxu0 0
  %209 = vmatprep.subr.bf16.mxu0 0
  %210 = vmatpush1.bf16.msra.mxu0 0
  %211 = vmatprep.subr.bf16.mxu0 0
  %212 = vmatpush1.bf16.msra.mxu0 0
  %213 = vmatprep.subr.bf16.mxu0 0
  %214 = vmatpush1.bf16.msra.mxu0 %v195
  %215 = vmatprep.subr.bf16.mxu0 0
  %216 = vmatpush1.bf16.msra.mxu0 %v194
  %217 = vmatprep.subr.bf16.mxu0 0
  %218 = vmatpush2.bf16.msra.mxu0 0
  %219 = vmatprep.subr.bf16.mxu0 0
  %220 = vmatpush2.bf16.msra.mxu0 0
  %221 = vmatprep.subr.bf16.mxu0 0
  %222 = vmatpush2.bf16.msra.mxu0 0
  %223 = vmatprep.subr.bf16.mxu0 0
  %224 = vmatpush2.bf16.msra.mxu0 0
  %225 = vmatprep.subr.bf16.mxu0 0
  %226 = vmatpush2.bf16.msra.mxu0 0
  %227 = vmatprep.subr.bf16.mxu0 0
  %228 = vmatpush2.bf16.msra.mxu0 0
  %229 = vmatprep.subr.bf16.mxu0 0
  %230 = vmatpush2.bf16.msra.mxu0 0
  %231 = vmatprep.subr.bf16.mxu0 0
  %232 = vmatpush2.bf16.msra.mxu0 0
  %233 = vmatprep.mubr.bf16.mxu0 0
  %234 = vmatmul.mubr.bf16.gmra.mxu0 %v199
  %v235 = vpop.f32.mrf.mxu0
  %v236 = vadd.f32 %v184, %v235
  %v237 = vpop.f32.mrf.mxu0
  %v238 = vpop.f32.mrf.mxu0
  %v239 = vadd.f32 %v184, %v238
  %v240 = vpop.f32.mrf.mxu0
  %241 = vdwg.mxu0
  %242 = vst [vmem:[%s7] sm:$0xff] %v236
  %243 = vst [vmem:[%s7 + $0x8] sm:$0xff] %v239
  // Predicated region
  $region30: #{detr_forward.5} parent=0 // pred_check
    _
  $region31: #{detr_forward.5} parent=0 // pred_check_branch
    %245 = sbr.rel (0) target = $region33
  $region32: #{detr_forward.5} parent=0 // pred_region
    _
  $region33: #{detr_forward.5} parent=0 // pred_fallthru
    _
  // Predicated region
  $region34: #{detr_forward.5} parent=0 // pred_check
    _
  $region35: #{detr_forward.5} parent=0 // pred_check_branch
    %247 = sbr.rel (0) target = $region37
  $region36: #{detr_forward.5} parent=0 // pred_region
    _
  $region37: #{detr_forward.5} parent=0 // pred_fallthru
    _

</llo_original>
